<compile_context>
chip_gen: v7x
topology: tpu7x:2x2x1
jax: 0.10.0
libtpu: 0.0.40
codegen_flags: <defaults>
</compile_context>

<pallas_src>
import jax
import jax.numpy as jnp
from jax.experimental import pallas as pl
from jax.experimental.pallas import tpu as pltpu

# ---- problem sizes (small, consistent with the forward pass) ----
B = 2        # batch
Z = 8        # latent dim
L = 256      # high-res wavelength grid length (multiple of 128 -> lane dense)
M = 64       # number of real (downsampled) wavelengths
MPAD = 128   # M padded to a full lane width for an unmasked flux store
H = 32       # generator hidden dim
NFREQ = 4    # positional-encoding frequencies
PE = 2 * NFREQ
DIN = Z + PE


def full_network_kernel(wl_ref, fr_ref, ph_ref, w1pe_ref, zt_ref, w1z_ref,
                        w2t_ref, b2_ref, wint_ref, flux_ref, gen_ref):
    """Single invocation, whole batch. All operands are whole-array refs."""
    # ---- positional encoding, one fused transcendental pass ----
    # rows 0..NFREQ-1: sin(f_k w); rows NFREQ..PE-1: sin(f_k w + pi/2) = cos
    ang = fr_ref[...] * wl_ref[...] + ph_ref[...]                         # (PE, L)
    pe = jnp.sin(ang)                                                     # (PE, L)

    # pe contribution of the first Linear: (H, PE) @ (PE, L) -> (H, L)
    pc = jnp.dot(w1pe_ref[...], pe, preferred_element_type=jnp.float32)   # (H, L)

    # latent + b1 contribution: (H, Z+1) @ (Z+1, B); ones row folds b1 in.
    z_aug = jnp.concatenate(
        [zt_ref[...], jnp.ones((1, B), jnp.float32)], axis=0)             # (Z+1, B)
    zc = jnp.dot(w1z_ref[...], z_aug, preferred_element_type=jnp.float32)  # (H, B)

    b2 = b2_ref[0, 0]                                                     # SMEM scalar

    # Per-batch ReLU hidden + second Linear; B=2 so two tiny K=32 matmuls.
    rows = []
    for b in range(B):
        h_b = jnp.maximum(pc + zc[:, b:b + 1], 0.0)                       # (H, L)
        rows.append(jnp.dot(w2t_ref[...], h_b,
                            preferred_element_type=jnp.float32))          # (1, L)
    out = jnp.concatenate(rows, axis=0) + b2                              # (B, L)
    gen_ref[...] = out                                                    # lane-dense store

    # Downsampling (linear interpolation) as a single MXU matmul.
    flux_ref[...] = jnp.dot(out, wint_ref[...],
                            preferred_element_type=jnp.float32)           # (B, MPAD)


def build_interp_matrix(grid, real):
    """(M, L) linear-interpolation weights mapping grid -> real wavelengths."""
    n = grid.shape[0]
    idx = jnp.clip(jnp.searchsorted(grid, real) - 1, 0, n - 2)
    x0 = grid[idx]
    x1 = grid[idx + 1]
    t = jnp.clip((real - x0) / (x1 - x0), 0.0, 1.0)
    m = real.shape[0]
    w = jnp.zeros((m, n), jnp.float32)
    w = w.at[jnp.arange(m), idx].set(1.0 - t)
    w = w.at[jnp.arange(m), idx + 1].add(t)
    return w


def init_params(key):
    k1, k2, k3, k4 = jax.random.split(key, 4)
    w1 = jax.random.normal(k1, (DIN, H), jnp.float32) / jnp.sqrt(DIN)
    b1 = jax.random.normal(k2, (1, H), jnp.float32) * 0.01
    w2 = jax.random.normal(k3, (H, 1), jnp.float32) / jnp.sqrt(H)
    b2 = jax.random.normal(k4, (1, 1), jnp.float32) * 0.01
    freqs = 1.0 / (10000.0 ** (2.0 * jnp.arange(NFREQ, dtype=jnp.float32) / PE))
    freqs = freqs[None, :]                             # (1, NFREQ)
    return w1, b1, w2, b2, freqs


@jax.jit
def prepare_constants(params, wavelength_grid, real_wavelengths):
    """One-time (per params / wavelength grids) construction of kernel operands.

    Hoisted out of the per-call hot path: searchsorted + scatters for the
    interpolation matrix, W1 splits/transposes, freq/phase stacking, padding.
    """
    w1, b1, w2, b2, freqs = params
    wl_row = wavelength_grid.reshape(1, L)                               # (1, L)
    fr = freqs.reshape(NFREQ, 1)
    fr_pe = jnp.concatenate([fr, fr], axis=0)                            # (PE, 1)
    ph_pe = jnp.concatenate(
        [jnp.zeros((NFREQ, 1), jnp.float32),
         jnp.full((NFREQ, 1), jnp.pi / 2, jnp.float32)], axis=0)         # (PE, 1)
    w1pe_t = w1[Z:, :].T                                                 # (H, PE)
    # first-layer latent weights with b1 folded in as the last K column
    w1z_aug_t = jnp.concatenate([w1[:Z, :], b1], axis=0).T               # (H, Z+1)
    w2_t = w2.T                                                          # (1, H)
    b2_s = b2.reshape(1, 1)                                              # (1, 1) -> SMEM
    # Interp weights transposed to (L, M), zero-padded to a full 128 lanes.
    wint_t = build_interp_matrix(wavelength_grid, real_wavelengths).T    # (L, M)
    wint_t = jnp.pad(wint_t, ((0, 0), (0, MPAD - M)))                    # (L, MPAD)
    return (wl_row, fr_pe, ph_pe, w1pe_t, w1z_aug_t, w2_t, b2_s, wint_t)


@jax.jit
def full_network(latent_z, consts):
    """Hot path: one tiny transpose, one pallas_call, two output views."""
    wl_row, fr_pe, ph_pe, w1pe_t, w1z_aug_t, w2_t, b2_s, wint_t = consts
    z_t = latent_z.T                                                     # (Z, B)

    vmem = pl.BlockSpec(memory_space=pltpu.MemorySpace.VMEM)
    smem = pl.BlockSpec(memory_space=pltpu.MemorySpace.SMEM)

    # Rough counts: PE matmul 131K + 2nd linear 33K + downsample 262K +
    # latent 1K + elementwise ~37K flops; PE*L = 2048 sin; ~135 KiB in,
    # ~3 KiB out.
    cost = pl.CostEstimate(flops=465_000, transcendentals=2_048,
                           bytes_accessed=138_000)

    flux_pad, gen = pl.pallas_call(
        full_network_kernel,
        out_shape=(jax.ShapeDtypeStruct((B, MPAD), jnp.float32),
                   jax.ShapeDtypeStruct((B, L), jnp.float32)),
        in_specs=[vmem, vmem, vmem, vmem, vmem, vmem, vmem, smem, vmem],
        out_specs=(vmem, vmem),
        cost_estimate=cost,
        # No grid: single invocation on one TensorCore (B=2 is latency-bound).
    )(wl_row, fr_pe, ph_pe, w1pe_t, z_t, w1z_aug_t, w2_t, b2_s, wint_t)

    generated_flux = flux_pad[:, :M]                                     # (B, M)
    generator_output = gen[:, :, None]                                   # (B, L, 1)
    return generated_flux, generator_output


def full_network_ref(latent_z, wavelength_grid, real_wavelengths, params):
    """Pure-JAX reference mirroring the PyTorch forward semantics."""
    w1, b1, w2, b2, freqs = params
    ang = wavelength_grid[:, None] * freqs                               # (L, NFREQ)
    pe = jnp.concatenate([jnp.sin(ang), jnp.cos(ang)], axis=-1)          # (L, PE)
    pe_b = jnp.broadcast_to(pe[None], (B, L, PE))
    z_b = jnp.broadcast_to(latent_z[:, None, :], (B, L, Z))
    x = jnp.concatenate([z_b, pe_b], axis=-1)                            # (B, L, DIN)
    h = jnp.maximum(x @ w1 + b1, 0.0)
    gen_out = h @ w2 + b2                                                # (B, L, 1)
    high_res = gen_out.reshape(B, L)
    w_int = build_interp_matrix(wavelength_grid, real_wavelengths)       # (M, L)
    flux = high_res @ w_int.T                                            # (B, M)
    return flux, gen_out


if __name__ == "__main__":
    key = jax.random.PRNGKey(0)
    kp, kz = jax.random.split(key)
    params = init_params(kp)

    latent_z = jax.random.normal(kz, (B, Z), jnp.float32)
    wavelength_grid = jnp.linspace(0.0, 10.0, L, dtype=jnp.float32)
    real_wavelengths = jnp.linspace(0.5, 9.5, M, dtype=jnp.float32)

    # One-time constant prep (outside the per-call hot path).
    consts = jax.block_until_ready(
        prepare_constants(params, wavelength_grid, real_wavelengths))

    flux, gen_out = full_network(latent_z, consts)
    jax.block_until_ready((flux, gen_out))

    flux_ref, gen_ref = full_network_ref(latent_z, wavelength_grid,
                                         real_wavelengths, params)
    assert flux.shape == (B, M) and gen_out.shape == (B, L, 1)
    assert jnp.allclose(flux, flux_ref, atol=1e-4, rtol=1e-4)
    assert jnp.allclose(gen_out, gen_ref, atol=1e-4, rtol=1e-4)
    print("KERNEL_OK")
</pallas_src>

<mosaic_0001>
module attributes {stable_mosaic.version = 11 : i64} {
  func.func private @main(%arg0: i32) attributes {dimension_semantics = [#tpu.dimension_semantics<core_parallel>], iteration_bounds = array<i64: 2>, tpu.core_type = #tpu.core_type<sc_scalar_subcore>, window_params = []} {
    return
  }
}

module attributes {stable_mosaic.version = 11 : i64} {
  func.func private @main(%arg0: i32) attributes {dimension_semantics = [#tpu.dimension_semantics<core_parallel>], iteration_bounds = array<i64: 2>, tpu.core_type = #tpu.core_type<sc_scalar_subcore>, window_params = []} {
    return
  }
}

</mosaic_0001>

<llo_original>
// kernel: custom-call.4
$region0: #{custom-call.4}
  %s0 = inlined_call_operand.vmem [shape: u32[64], index: 0, kind: output, shape index: {}]

// kernel: ne.4
$region0: #{ne.4}
  #allocation0 [shape = 's32[1]{0}', space=sflag, size = 0x4, scoped, tag = 'scoped memory for ne.4']
  %s0 = inlined_call_operand.vmem [shape: f32[64], index: 0, kind: input, shape index: {}, may-alias: {0,1}]
  %s1 = inlined_call_operand.vmem [shape: f32[64], index: 1, kind: input, shape index: {}, may-alias: {0,1}]
  %s2 = inlined_call_operand.vmem [shape: pred[64], index: 2, kind: output, shape index: {}]
  %v3 = vld [vmem:[%s0] sm:$0x1]
  %v4 = vld [vmem:[%s1] sm:$0x1]
  %5 = xla_tuple %v3, %v4
  %6 = xla_tuple %5
  %vm7 = vcmp.ne.f32.partialorder %v3, %v4
  %v8 = vsel %vm7, 1, 0
  %9 = xla_tuple %v8
  %v10 = vpack.c.b16 0, %v8
  %v11 = vpack.c.b8 0, %v10
  %13 = vst [vmem:[%s2] sm:$0x1] %v11

</llo_original>
